<compile_context>
chip_gen: v7x
topology: tpu7x:2x2x1
jax: 0.10.0
libtpu: 0.0.40
codegen_flags: <defaults>
</compile_context>

<pallas_src>
import functools
import math

import jax
import jax.numpy as jnp
from jax.experimental import pallas as pl
from jax.experimental.pallas import tpu as pltpu

TOK_BLOCK = 256  # tokens per grid step


def _round_up(x, m):
    return (x + m - 1) // m * m


def token_embedding_kernel(tok_ref, emb_ref, out_ref, *, scale):
    # tok_ref : VMEM (TOK_BLOCK, 1) int32  -- token ids for this block (column)
    # emb_ref : VMEM (V, E)                -- full embedding table (constant block)
    # out_ref : VMEM (TOK_BLOCK, E)        -- output tile
    tok = tok_ref[...]                                      # (T, 1) int32
    t, _ = tok.shape
    v = emb_ref.shape[0]

    # Block-wide one-hot gather on the MXU: (T, V) @ (V, E) -> (T, E).
    vocab_iota = jax.lax.broadcasted_iota(jnp.int32, (t, v), 1)
    one_hot = (tok == vocab_iota).astype(emb_ref.dtype)     # (T, V)
    gathered = jnp.dot(one_hot, emb_ref[...],
                       preferred_element_type=jnp.float32)  # (T, E) f32

    # Single full-tile store (unmasked when E % 128 == 0).
    out_ref[...] = (gathered * scale).astype(out_ref.dtype)


def token_embedding(tokens, emb_table, *, tok_block=TOK_BLOCK):
    """tokens: (B, S) integer ids; emb_table: (V, E). Returns (B, S, E)."""
    B, S = tokens.shape
    V, E = emb_table.shape
    N = B * S
    n_blocks = pl.cdiv(N, tok_block)
    N_pad = n_blocks * tok_block
    scale = math.sqrt(E)

    # Flatten, cast (the ".long()" in the PyTorch module), pad, make a column.
    tok_flat = tokens.reshape(N).astype(jnp.int32)
    tok_col = jnp.pad(tok_flat, (0, N_pad - N)).reshape(N_pad, 1)

    # VMEM budget: double-buffered table / token / output blocks + one-hot temp.
    itemsize = jnp.dtype(emb_table.dtype).itemsize
    table_buf = _round_up(V, 8) * _round_up(E, 128) * itemsize
    tok_buf = _round_up(tok_block, 8) * 128 * 4
    out_buf = _round_up(tok_block, 8) * _round_up(E, 128) * itemsize
    onehot_tmp = _round_up(tok_block, 8) * _round_up(V, 128) * 4
    needed = 2 * (table_buf + tok_buf + out_buf) + onehot_tmp + (4 << 20)
    vmem_limit = max(needed, 32 << 20)

    out_flat = pl.pallas_call(
        functools.partial(token_embedding_kernel, scale=scale),
        out_shape=jax.ShapeDtypeStruct((N_pad, E), emb_table.dtype),
        grid=(n_blocks,),
        in_specs=[
            # token-id column for this block: one vector load per step
            pl.BlockSpec((tok_block, 1), lambda i: (i, 0)),
            # full table, constant block index -> DMA'd once, stays resident
            pl.BlockSpec((V, E), lambda i: (0, 0)),
        ],
        out_specs=pl.BlockSpec((tok_block, E), lambda i: (i, 0)),
        compiler_params=pltpu.CompilerParams(
            dimension_semantics=("parallel",),   # no carried state; megacore-shardable
            vmem_limit_bytes=int(vmem_limit),
        ),
    )(tok_col, emb_table)

    return out_flat[:N].reshape(B, S, E)


if __name__ == "__main__":
    key = jax.random.PRNGKey(0)
    k_emb, k_tok = jax.random.split(key)

    vocab_size = 64
    emb_size = 128          # lane-dense output (multiple of 128)
    batch, seq = 3, 100     # N = 300 -> padded to 512 -> 2 grid steps

    # Deterministic synthetic parameters (nn.Embedding weight analogue).
    emb_table = jax.random.normal(k_emb, (vocab_size, emb_size), dtype=jnp.float32)
    tokens = jax.random.randint(k_tok, (batch, seq), 0, vocab_size, dtype=jnp.int32)

    out = token_embedding(tokens, emb_table)
    out = jax.block_until_ready(out)

    # Pure-JAX reference: embedding lookup scaled by sqrt(emb_size).
    ref = emb_table[tokens] * math.sqrt(emb_size)
    assert out.shape == (batch, seq, emb_size)
    assert jnp.allclose(out, ref, atol=1e-4, rtol=1e-4), float(jnp.max(jnp.abs(out - ref)))

    print("KERNEL_OK")
</pallas_src>

<mosaic_0001>
module attributes {stable_mosaic.version = 11 : i64} {
  func.func @token_embedding_kernel(%arg0: i32, %arg1: memref<256x1xi32, #tpu.memory_space<vmem>>, %arg2: memref<64x128xf32, #tpu.memory_space<vmem>>, %arg3: memref<256x128xf32, #tpu.memory_space<vmem>>) attributes {dimension_semantics = [#tpu.dimension_semantics<parallel>], iteration_bounds = array<i64: 2>, scalar_prefetch = 0 : i64, scratch_operands = 0 : i64, tpu.core_type = #tpu.core_type<tc>, window_params = [{transform_indices = @transform_0, window_bounds = array<i64: 256, 1>}, {pipeline_mode = #tpu.pipeline_mode<synchronous>, transform_indices = @transform_1, window_bounds = array<i64: 64, 128>}, {transform_indices = @transform_2, window_bounds = array<i64: 256, 128>}]} {
    %c0 = arith.constant 0 : index
    %c0_0 = arith.constant 0 : index
    %0 = vector.load %arg1[%c0, %c0_0] : memref<256x1xi32, #tpu.memory_space<vmem>>, vector<256x1xi32>
    %1 = tpu.iota {dimensions = array<i32: 1>} : vector<256x64xi32>
    %2 = vector.broadcast %0 : vector<256x1xi32> to vector<256x64xi32>
    %3 = arith.cmpi eq, %2, %1 : vector<256x64xi32>
    %4 = arith.extui %3 : vector<256x64xi1> to vector<256x64xi32>
    %5 = arith.sitofp %4 : vector<256x64xi32> to vector<256x64xf32>
    %c0_1 = arith.constant 0 : index
    %c0_2 = arith.constant 0 : index
    %6 = vector.load %arg2[%c0_1, %c0_2] : memref<64x128xf32, #tpu.memory_space<vmem>>, vector<64x128xf32>
    %cst = arith.constant dense<0.000000e+00> : vector<256x128xf32>
    %7 = tpu.matmul %5, %6, %cst {dimension_numbers = #tpu.dot_dimension_numbers<[1], [0], [0], [1], [0, 0, 1, 1], [], []>} : vector<256x64xf32>, vector<64x128xf32>, vector<256x128xf32> -> vector<256x128xf32>
    %cst_3 = arith.constant 11.3137083 : f32
    %8 = vector.broadcast %cst_3 : f32 to vector<256x128xf32>
    %9 = arith.mulf %7, %8 : vector<256x128xf32>
    %c0_4 = arith.constant 0 : index
    %c0_5 = arith.constant 0 : index
    %10 = vector.load %arg3[%c0_4, %c0_5] : memref<256x128xf32, #tpu.memory_space<vmem>>, vector<256x128xf32>
    tpu.vector_store %arg3[%c0_4, %c0_5], %9 {strides = array<i32>} : memref<256x128xf32, #tpu.memory_space<vmem>>, vector<256x128xf32>,
    return
  }
  func.func @transform_0(%arg0: i32) -> (i32, i32) {
    %c0_i32 = arith.constant 0 : i32
    %c0_i32_0 = arith.constant 0 : i32
    return %arg0, %c0_i32 : i32, i32
  }
  func.func @transform_1(%arg0: i32) -> (i32, i32) {
    %c0_i32 = arith.constant 0 : i32
    %c0_i32_0 = arith.constant 0 : i32
    %c0_i32_1 = arith.constant 0 : i32
    return %c0_i32, %c0_i32_0 : i32, i32
  }
  func.func @transform_2(%arg0: i32) -> (i32, i32) {
    %c0_i32 = arith.constant 0 : i32
    %c0_i32_0 = arith.constant 0 : i32
    return %arg0, %c0_i32 : i32, i32
  }
}

</mosaic_0001>

<llo_original>
// kernel: tpu_custom_call.1
$region0: #{tpu_custom_call.1}
  #allocation0 [shape = 'u32[]', space=smem, size = 0x4, offset = 0x4, fixed_abs, tag = 'smem constant byte address 0x4 - core index']
  #allocation1 [shape = 'u32[144,128]{1,0:T(1,128)}', space=vmem, size = 0x12000, scoped, tag = 'internal scratch']
  %s0 = inlined_call_operand.vmem [shape: s32[512,1], index: 0, kind: input, shape index: {}]
  %s1 = inlined_call_operand.vmem [shape: f32[64,128], index: 1, kind: input, shape index: {}]
  %s2 = inlined_call_operand.hbm [shape: f32[512,128], index: 2, kind: output, shape index: {}]
  %s3 = sld [smem:[#allocation0]]
  $region41: #{tpu_custom_call.1} parent=0
    _
  %s5 = ssub.s32 1, %s3
  %s6 = scalar_select 0, %s5, %s3
  $region1: #{tpu_custom_call.1} parent=0
    #allocation2 [shape = 'u8[262144]{0}', space=vmem, size = 0x40000, scoped, tag = 'output window, operand 0']
    #allocation3 [shape = 's32[2]{0}', space=sflag, size = 0x8, scoped, tag = 'scoped memory for tpu_custom_call.1']
    %7 = vsyncpa [#allocation3], 0
    %s8 = scalar_lea.sflag [#allocation3], 1
    %9 = vsyncpa %s8, 0
    loop: start=0, step=1, limit=4
    $region2: #{tpu_custom_call.1} parent=1 // loop_pre_header
      _
    $region3: #{tpu_custom_call.1} parent=1 // loop_header
      %s11 = sphi 0, %s15
      %p12 = scmp.ge.s32.totalorder %s11, 4
      %s21 = sphi 0, %s23
      %s24 = sphi 0, %s21
      %s25 = sphi 0, %s24
      %s41 = sphi 0, %s25
      %s45 = sphi 0, %s45
      %s47 = sphi 0, %s45
      %s48 = sphi 0, %s47
      %s62 = sphi 0, %s48
      %s68 = sphi 0, %s70
      %s71 = sphi 0, %s68
      %s72 = sphi 0, %s71
      %s88 = sphi 0, %s72
    $region4: #{tpu_custom_call.1} parent=1 // loop_header_branch
      %14 = sbr.rel (%p12) target = $region8
    $region5: #{tpu_custom_call.1} parent=1 // loop_body
      %s16 = ssub.s32 %s11, 1
      %s17 = ssub.s32 %s11, 2
      %s18 = sadd.s32 %s11, 1
      %s19 = ssub.s32 %s11, %s18
      %p20 = scmp.eq.s32.totalorder %s19, 0
      %s22 = sadd.s32 %s21, 1
      %s23 = scalar_select %p20, %s21, %s22
      %p26 = pneg %p20
      %p27 = scmp.eq.s32.totalorder %s11, 1
      %p28 = por %p26, %p27
      %p29 = scmp.ne.s32.totalorder %s21, %s24
      %p30 = scmp.eq.s32.totalorder %s11, 0
      %p31 = por %p29, %p30
      %p32 = scmp.ne.s32.totalorder %s21, %s24
      %p33 = scmp.eq.s32.totalorder %s16, 1
      %p34 = por %p32, %p33
      %p35 = scmp.ne.s32.totalorder %s24, %s25
      %p36 = scmp.eq.s32.totalorder %s16, 0
      %p37 = por %p35, %p36
      %p38 = scmp.ne.s32.totalorder %s24, %s25
      %p39 = scmp.eq.s32.totalorder %s17, 1
      %p40 = por %p38, %p39
      %p42 = scmp.ne.s32.totalorder %s25, %s41
      %p43 = scmp.eq.s32.totalorder %s17, 0
      %p44 = por %p42, %p43
      %s46 = sadd.s32 %s45, 1
      %p49 = scmp.eq.s32.totalorder %s11, 1
      %p50 = scmp.ne.s32.totalorder %s45, %s47
      %p51 = scmp.eq.s32.totalorder %s11, 0
      %p52 = por %p50, %p51
      %p53 = scmp.ne.s32.totalorder %s45, %s47
      %p54 = scmp.eq.s32.totalorder %s16, 1
      %p55 = por %p53, %p54
      %p56 = scmp.ne.s32.totalorder %s47, %s48
      %p57 = scmp.eq.s32.totalorder %s16, 0
      %p58 = por %p56, %p57
      %p59 = scmp.ne.s32.totalorder %s47, %s48
      %p60 = scmp.eq.s32.totalorder %s17, 1
      %p61 = por %p59, %p60
      %p63 = scmp.ne.s32.totalorder %s48, %s62
      %p64 = scmp.eq.s32.totalorder %s17, 0
      %p65 = por %p63, %p64
      %s66 = ssub.s32 %s11, %s18
      %p67 = scmp.eq.s32.totalorder %s66, 0
      %s69 = sadd.s32 %s68, 1
      %s70 = scalar_select %p67, %s68, %s69
      %p73 = pneg %p67
      %p74 = scmp.eq.s32.totalorder %s11, 1
      %p75 = por %p73, %p74
      %p76 = scmp.ne.s32.totalorder %s68, %s71
      %p77 = scmp.eq.s32.totalorder %s11, 0
      %p78 = por %p76, %p77
      %p79 = scmp.ne.s32.totalorder %s68, %s71
      %p80 = scmp.eq.s32.totalorder %s16, 1
      %p81 = por %p79, %p80
      %p82 = scmp.ne.s32.totalorder %s71, %s72
      %p83 = scmp.eq.s32.totalorder %s16, 0
      %p84 = por %p82, %p83
      %p85 = scmp.ne.s32.totalorder %s71, %s72
      %p86 = scmp.eq.s32.totalorder %s17, 1
      %p87 = por %p85, %p86
      %p89 = scmp.ne.s32.totalorder %s72, %s88
      %p90 = scmp.eq.s32.totalorder %s17, 0
      %p91 = por %p89, %p90
      %p92 = scmp.le.s32.totalorder 1, %s11
      %p93 = scmp.lt.s32.totalorder %s11, 3
      %p94 = pnand %p92, %p93
      %p95 = pneg %p94
      // Predicated region
      $region9: #{tpu_custom_call.1} parent=5 // pred_check
        _
      $region10: #{tpu_custom_call.1} parent=5 // pred_check_branch
        %97 = sbr.rel (%p94) target = $region12
      $region11: #{tpu_custom_call.1} parent=5 // pred_region
        %s98 = ssub.s32 %s11, 1
        // Predicated region
        $region13: #{tpu_custom_call.1} parent=11 // pred_check
          %p99 = pneg %p58
        $region14: #{tpu_custom_call.1} parent=11 // pred_check_branch
          %101 = sbr.rel (%p99) target = $region16
        $region15: #{tpu_custom_call.1} parent=11 // pred_region
          _
        $region16: #{tpu_custom_call.1} parent=11 // pred_fallthru
          _
      $region12: #{tpu_custom_call.1} parent=5 // pred_fallthru
        _
      %p102 = scmp.lt.s32.totalorder %s11, 2
      // Predicated region
      $region17: #{tpu_custom_call.1} parent=5 // pred_check
        %p103 = pneg %p102
      $region18: #{tpu_custom_call.1} parent=5 // pred_check_branch
        %105 = sbr.rel (%p103) target = $region20
      $region19: #{tpu_custom_call.1} parent=5 // pred_region
        // Predicated region
        $region21: #{tpu_custom_call.1} parent=19 // pred_check
          %p106 = pneg %p31
        $region22: #{tpu_custom_call.1} parent=19 // pred_check_branch
          %108 = sbr.rel (%p106) target = $region24
        $region23: #{tpu_custom_call.1} parent=19 // pred_region
          %s109 = smul.u32 32, %s11
          %p110 = scmp.lt.s32.totalorder %s109, 63
          %s111 = scalar_select %p110, %s109, 63
          %s112 = smul.addr %s111, 8
          %s113 = scalar_lea.vmem %s0, %s112
          %s114 = smul.u32 32, %s11
        $region24: #{tpu_custom_call.1} parent=19 // pred_fallthru
          _
      $region20: #{tpu_custom_call.1} parent=5 // pred_fallthru
        _
      %p115 = scmp.le.s32.totalorder 1, %s11
      %p116 = scmp.lt.s32.totalorder %s11, 3
      %p117 = pnand %p115, %p116
      %p118 = pneg %p117
      // Predicated region
      $region25: #{tpu_custom_call.1} parent=5 // pred_check
        _
      $region26: #{tpu_custom_call.1} parent=5 // pred_check_branch
        %120 = sbr.rel (%p117) target = $region28
      $region27: #{tpu_custom_call.1} parent=5 // pred_region
        %s121 = ssub.s32 %s11, 1
        %s122 = smul.u32 32, %s16
        %p123 = scmp.lt.s32.totalorder %s122, 63
        %s124 = scalar_select %p123, %s122, 63
        %s125 = smul.addr %s124, 8
        %s126 = scalar_lea.vmem %s0, %s125
        %p127 = pneg %p37
        %p128 = pneg %p34
        %p129 = pneg %p58
        %p130 = pneg %p55
        %p131 = pneg %p84
        %p132 = pneg %p81
        %s133 = sand.u32 %s71, 1
        %s134 = scalar_lea.sflag [#allocation3], %s133
        %s135 = sand.u32 %s71, 1
        %s136 = smul.addr %s135, 256
        %s137 = scalar_lea.vmem [#allocation2], %s136
        %s138 = smul.u32 32, %s16
        %p139 = scmp.lt.s32.totalorder %s138, 63
        %s140 = scalar_select %p139, %s138, 63
        %s141 = smul.addr %s140, 8
        %s142 = scalar_lea.vmem %s0, %s141
        %s143 = smul.u32 32, %s16
        %s144 = smul.u32 32, %s16
        %v145 = vld [vmem:[%s142] sm:$0xff]
        %v146 = vld [vmem:[%s142 + $0x8] sm:$0xff]
        %v147 = vld [vmem:[%s142 + $0x10] sm:$0xff]
        %v148 = vld [vmem:[%s142 + $0x18] sm:$0xff]
        %v149 = vld [vmem:[%s142 + $0x20] sm:$0xff]
        %v150 = vld [vmem:[%s142 + $0x28] sm:$0xff]
        %v151 = vld [vmem:[%s142 + $0x30] sm:$0xff]
        %v152 = vld [vmem:[%s142 + $0x38] sm:$0xff]
        %v153 = vld [vmem:[%s142 + $0x40] sm:$0xff]
        %v154 = vld [vmem:[%s142 + $0x48] sm:$0xff]
        %v155 = vld [vmem:[%s142 + $0x50] sm:$0xff]
        %v156 = vld [vmem:[%s142 + $0x58] sm:$0xff]
        %v157 = vld [vmem:[%s142 + $0x60] sm:$0xff]
        %v158 = vld [vmem:[%s142 + $0x68] sm:$0xff]
        %v159 = vld [vmem:[%s142 + $0x70] sm:$0xff]
        %v160 = vld [vmem:[%s142 + $0x78] sm:$0xff]
        %v161 = vld [vmem:[%s142 + $0x80] sm:$0xff]
        %v162 = vld [vmem:[%s142 + $0x88] sm:$0xff]
        %v163 = vld [vmem:[%s142 + $0x90] sm:$0xff]
        %v164 = vld [vmem:[%s142 + $0x98] sm:$0xff]
        %v165 = vld [vmem:[%s142 + $0xa0] sm:$0xff]
        %v166 = vld [vmem:[%s142 + $0xa8] sm:$0xff]
        %v167 = vld [vmem:[%s142 + $0xb0] sm:$0xff]
        %v168 = vld [vmem:[%s142 + $0xb8] sm:$0xff]
        %v169 = vld [vmem:[%s142 + $0xc0] sm:$0xff]
        %v170 = vld [vmem:[%s142 + $0xc8] sm:$0xff]
        %v171 = vld [vmem:[%s142 + $0xd0] sm:$0xff]
        %v172 = vld [vmem:[%s142 + $0xd8] sm:$0xff]
        %v173 = vld [vmem:[%s142 + $0xe0] sm:$0xff]
        %v174 = vld [vmem:[%s142 + $0xe8] sm:$0xff]
        %v175 = vld [vmem:[%s142 + $0xf0] sm:$0xff]
        %v176 = vld [vmem:[%s142 + $0xf8] sm:$0xff]
        %v177 = vlaneseq
        %v178 = vand.u32 %v177, 127
        %179 = vset.pattern.permute.xlu0 0
        %180 = vperm.xlu0 %179, %v145
        %v181 = vpop.permute.xlu0 %180
        %182 = vset.pattern.permute.xlu0 0
        %183 = vperm.xlu0 %182, %v146
        %v184 = vpop.permute.xlu0 %183
        %185 = vset.pattern.permute.xlu0 0
        %186 = vperm.xlu0 %185, %v147
        %v187 = vpop.permute.xlu0 %186
        %188 = vset.pattern.permute.xlu0 0
        %189 = vperm.xlu0 %188, %v148
        %v190 = vpop.permute.xlu0 %189
        %191 = vset.pattern.permute.xlu0 0
        %192 = vperm.xlu0 %191, %v149
        %v193 = vpop.permute.xlu0 %192
        %194 = vset.pattern.permute.xlu0 0
        %195 = vperm.xlu0 %194, %v150
        %v196 = vpop.permute.xlu0 %195
        %197 = vset.pattern.permute.xlu0 0
        %198 = vperm.xlu0 %197, %v151
        %v199 = vpop.permute.xlu0 %198
        %200 = vset.pattern.permute.xlu0 0
        %201 = vperm.xlu0 %200, %v152
        %v202 = vpop.permute.xlu0 %201
        %203 = vset.pattern.permute.xlu0 0
        %204 = vperm.xlu0 %203, %v153
        %v205 = vpop.permute.xlu0 %204
        %206 = vset.pattern.permute.xlu0 0
        %207 = vperm.xlu0 %206, %v154
        %v208 = vpop.permute.xlu0 %207
        %209 = vset.pattern.permute.xlu0 0
        %210 = vperm.xlu0 %209, %v155
        %v211 = vpop.permute.xlu0 %210
        %212 = vset.pattern.permute.xlu0 0
        %213 = vperm.xlu0 %212, %v156
        %v214 = vpop.permute.xlu0 %213
        %215 = vset.pattern.permute.xlu0 0
        %216 = vperm.xlu0 %215, %v157
        %v217 = vpop.permute.xlu0 %216
        %218 = vset.pattern.permute.xlu0 0
        %219 = vperm.xlu0 %218, %v158
        %v220 = vpop.permute.xlu0 %219
        %221 = vset.pattern.permute.xlu0 0
        %222 = vperm.xlu0 %221, %v159
        %v223 = vpop.permute.xlu0 %222
        %224 = vset.pattern.permute.xlu0 0
        %225 = vperm.xlu0 %224, %v160
        %v226 = vpop.permute.xlu0 %225
        %227 = vset.pattern.permute.xlu0 0
        %228 = vperm.xlu0 %227, %v161
        %v229 = vpop.permute.xlu0 %228
        %230 = vset.pattern.permute.xlu0 0
        %231 = vperm.xlu0 %230, %v162
        %v232 = vpop.permute.xlu0 %231
        %233 = vset.pattern.permute.xlu0 0
        %234 = vperm.xlu0 %233, %v163
        %v235 = vpop.permute.xlu0 %234
        %236 = vset.pattern.permute.xlu0 0
        %237 = vperm.xlu0 %236, %v164
        %v238 = vpop.permute.xlu0 %237
        %239 = vset.pattern.permute.xlu0 0
        %240 = vperm.xlu0 %239, %v165
        %v241 = vpop.permute.xlu0 %240
        %242 = vset.pattern.permute.xlu0 0
        %243 = vperm.xlu0 %242, %v166
        %v244 = vpop.permute.xlu0 %243
        %245 = vset.pattern.permute.xlu0 0
        %246 = vperm.xlu0 %245, %v167
        %v247 = vpop.permute.xlu0 %246
        %248 = vset.pattern.permute.xlu0 0
        %249 = vperm.xlu0 %248, %v168
        %v250 = vpop.permute.xlu0 %249
        %251 = vset.pattern.permute.xlu0 0
        %252 = vperm.xlu0 %251, %v169
        %v253 = vpop.permute.xlu0 %252
        %254 = vset.pattern.permute.xlu0 0
        %255 = vperm.xlu0 %254, %v170
        %v256 = vpop.permute.xlu0 %255
        %257 = vset.pattern.permute.xlu0 0
        %258 = vperm.xlu0 %257, %v171
        %v259 = vpop.permute.xlu0 %258
        %260 = vset.pattern.permute.xlu0 0
        %261 = vperm.xlu0 %260, %v172
        %v262 = vpop.permute.xlu0 %261
        %263 = vset.pattern.permute.xlu0 0
        %264 = vperm.xlu0 %263, %v173
        %v265 = vpop.permute.xlu0 %264
        %266 = vset.pattern.permute.xlu0 0
        %267 = vperm.xlu0 %266, %v174
        %v268 = vpop.permute.xlu0 %267
        %269 = vset.pattern.permute.xlu0 0
        %270 = vperm.xlu0 %269, %v175
        %v271 = vpop.permute.xlu0 %270
        %272 = vset.pattern.permute.xlu0 0
        %273 = vperm.xlu0 %272, %v176
        %v274 = vpop.permute.xlu0 %273
        %vm275 = vcmp.eq.s32.totalorder %v181, %v178
        %vm276 = vcmp.eq.s32.totalorder %v184, %v178
        %vm277 = vcmp.eq.s32.totalorder %v187, %v178
        %vm278 = vcmp.eq.s32.totalorder %v190, %v178
        %vm279 = vcmp.eq.s32.totalorder %v193, %v178
        %vm280 = vcmp.eq.s32.totalorder %v196, %v178
        %vm281 = vcmp.eq.s32.totalorder %v199, %v178
        %vm282 = vcmp.eq.s32.totalorder %v202, %v178
        %vm283 = vcmp.eq.s32.totalorder %v205, %v178
        %vm284 = vcmp.eq.s32.totalorder %v208, %v178
        %vm285 = vcmp.eq.s32.totalorder %v211, %v178
        %vm286 = vcmp.eq.s32.totalorder %v214, %v178
        %vm287 = vcmp.eq.s32.totalorder %v217, %v178
        %vm288 = vcmp.eq.s32.totalorder %v220, %v178
        %vm289 = vcmp.eq.s32.totalorder %v223, %v178
        %vm290 = vcmp.eq.s32.totalorder %v226, %v178
        %vm291 = vcmp.eq.s32.totalorder %v229, %v178
        %vm292 = vcmp.eq.s32.totalorder %v232, %v178
        %vm293 = vcmp.eq.s32.totalorder %v235, %v178
        %vm294 = vcmp.eq.s32.totalorder %v238, %v178
        %vm295 = vcmp.eq.s32.totalorder %v241, %v178
        %vm296 = vcmp.eq.s32.totalorder %v244, %v178
        %vm297 = vcmp.eq.s32.totalorder %v247, %v178
        %vm298 = vcmp.eq.s32.totalorder %v250, %v178
        %vm299 = vcmp.eq.s32.totalorder %v253, %v178
        %vm300 = vcmp.eq.s32.totalorder %v256, %v178
        %vm301 = vcmp.eq.s32.totalorder %v259, %v178
        %vm302 = vcmp.eq.s32.totalorder %v262, %v178
        %vm303 = vcmp.eq.s32.totalorder %v265, %v178
        %vm304 = vcmp.eq.s32.totalorder %v268, %v178
        %vm305 = vcmp.eq.s32.totalorder %v271, %v178
        %vm306 = vcmp.eq.s32.totalorder %v274, %v178
        %v307 = vsel %vm275, 1, 0
        %v308 = vsel %vm276, 1, 0
        %v309 = vsel %vm277, 1, 0
        %v310 = vsel %vm278, 1, 0
        %v311 = vsel %vm279, 1, 0
        %v312 = vsel %vm280, 1, 0
        %v313 = vsel %vm281, 1, 0
        %v314 = vsel %vm282, 1, 0
        %v315 = vsel %vm283, 1, 0
        %v316 = vsel %vm284, 1, 0
        %v317 = vsel %vm285, 1, 0
        %v318 = vsel %vm286, 1, 0
        %v319 = vsel %vm287, 1, 0
        %v320 = vsel %vm288, 1, 0
        %v321 = vsel %vm289, 1, 0
        %v322 = vsel %vm290, 1, 0
        %v323 = vsel %vm291, 1, 0
        %v324 = vsel %vm292, 1, 0
        %v325 = vsel %vm293, 1, 0
        %v326 = vsel %vm294, 1, 0
        %v327 = vsel %vm295, 1, 0
        %v328 = vsel %vm296, 1, 0
        %v329 = vsel %vm297, 1, 0
        %v330 = vsel %vm298, 1, 0
        %v331 = vsel %vm299, 1, 0
        %v332 = vsel %vm300, 1, 0
        %v333 = vsel %vm301, 1, 0
        %v334 = vsel %vm302, 1, 0
        %v335 = vsel %vm303, 1, 0
        %v336 = vsel %vm304, 1, 0
        %v337 = vsel %vm305, 1, 0
        %v338 = vsel %vm306, 1, 0
        %v339 = vcvt.s32.f32 %v307
        %v340 = vcvt.s32.f32 %v308
        %v341 = vcvt.s32.f32 %v309
        %v342 = vcvt.s32.f32 %v310
        %v343 = vcvt.s32.f32 %v311
        %v344 = vcvt.s32.f32 %v312
        %v345 = vcvt.s32.f32 %v313
        %v346 = vcvt.s32.f32 %v314
        %v347 = vcvt.s32.f32 %v315
        %v348 = vcvt.s32.f32 %v316
        %v349 = vcvt.s32.f32 %v317
        %v350 = vcvt.s32.f32 %v318
        %v351 = vcvt.s32.f32 %v319
        %v352 = vcvt.s32.f32 %v320
        %v353 = vcvt.s32.f32 %v321
        %v354 = vcvt.s32.f32 %v322
        %v355 = vcvt.s32.f32 %v323
        %v356 = vcvt.s32.f32 %v324
        %v357 = vcvt.s32.f32 %v325
        %v358 = vcvt.s32.f32 %v326
        %v359 = vcvt.s32.f32 %v327
        %v360 = vcvt.s32.f32 %v328
        %v361 = vcvt.s32.f32 %v329
        %v362 = vcvt.s32.f32 %v330
        %v363 = vcvt.s32.f32 %v331
        %v364 = vcvt.s32.f32 %v332
        %v365 = vcvt.s32.f32 %v333
        %v366 = vcvt.s32.f32 %v334
        %v367 = vcvt.s32.f32 %v335
        %v368 = vcvt.s32.f32 %v336
        %v369 = vcvt.s32.f32 %v337
        %v370 = vcvt.s32.f32 %v338
        %v371 = vld [vmem:[%s1] sm:$0xff]
        %v372 = vld [vmem:[%s1 + $0x8] sm:$0xff]
        %v373 = vld [vmem:[%s1 + $0x10] sm:$0xff]
        %v374 = vld [vmem:[%s1 + $0x18] sm:$0xff]
        %v375 = vld [vmem:[%s1 + $0x20] sm:$0xff]
        %v376 = vld [vmem:[%s1 + $0x28] sm:$0xff]
        %v377 = vld [vmem:[%s1 + $0x30] sm:$0xff]
        %v378 = vld [vmem:[%s1 + $0x38] sm:$0xff]
        %vm379 = vcmask 523264
        %v381 = vsel %vm379, %v339, 0
        %v384 = vsel %vm379, %v340, 0
        %v387 = vsel %vm379, %v341, 0
        %v390 = vsel %vm379, %v342, 0
        %v393 = vsel %vm379, %v343, 0
        %v396 = vsel %vm379, %v344, 0
        %v399 = vsel %vm379, %v345, 0
        %v402 = vsel %vm379, %v346, 0
        %v405 = vsel %vm379, %v347, 0
        %v408 = vsel %vm379, %v348, 0
        %v411 = vsel %vm379, %v349, 0
        %v414 = vsel %vm379, %v350, 0
        %v417 = vsel %vm379, %v351, 0
        %v420 = vsel %vm379, %v352, 0
        %v423 = vsel %vm379, %v353, 0
        %v426 = vsel %vm379, %v354, 0
        %v429 = vsel %vm379, %v355, 0
        %v432 = vsel %vm379, %v356, 0
        %v435 = vsel %vm379, %v357, 0
        %v438 = vsel %vm379, %v358, 0
        %v441 = vsel %vm379, %v359, 0
        %v444 = vsel %vm379, %v360, 0
        %v447 = vsel %vm379, %v361, 0
        %v450 = vsel %vm379, %v362, 0
        %v453 = vsel %vm379, %v363, 0
        %v456 = vsel %vm379, %v364, 0
        %v459 = vsel %vm379, %v365, 0
        %v462 = vsel %vm379, %v366, 0
        %v465 = vsel %vm379, %v367, 0
        %v468 = vsel %vm379, %v368, 0
        %v471 = vsel %vm379, %v369, 0
        %v474 = vsel %vm379, %v370, 0
        %476 = vmatprep.subr.mxu0 0.0
        %477 = vmatpush1.msra.mxu0 %v371
        %478 = vmatprep.subr.mxu0 0.0
        %479 = vmatpush1.msra.mxu0 %v372
        %480 = vmatprep.subr.mxu0 0.0
        %481 = vmatpush1.msra.mxu0 %v373
        %482 = vmatprep.subr.mxu0 0.0
        %483 = vmatpush1.msra.mxu0 %v374
        %484 = vmatprep.subr.mxu0 0.0
        %485 = vmatpush1.msra.mxu0 %v375
        %486 = vmatprep.subr.mxu0 0.0
        %487 = vmatpush1.msra.mxu0 %v376
        %488 = vmatprep.subr.mxu0 0.0
        %489 = vmatpush1.msra.mxu0 %v377
        %490 = vmatprep.subr.mxu0 0.0
        %491 = vmatpush1.msra.mxu0 %v378
        %492 = vmatprep.subr.mxu0 0.0
        %493 = vmatpush1.msra.mxu0 0.0
        %494 = vmatprep.subr.mxu0 0.0
        %495 = vmatpush1.msra.mxu0 0.0
        %496 = vmatprep.subr.mxu0 0.0
        %497 = vmatpush1.msra.mxu0 0.0
        %498 = vmatprep.subr.mxu0 0.0
        %499 = vmatpush1.msra.mxu0 0.0
        %500 = vmatprep.subr.mxu0 0.0
        %501 = vmatpush1.msra.mxu0 0.0
        %502 = vmatprep.subr.mxu0 0.0
        %503 = vmatpush1.msra.mxu0 0.0
        %504 = vmatprep.subr.mxu0 0.0
        %505 = vmatpush1.msra.mxu0 0.0
        %506 = vmatprep.subr.mxu0 0.0
        %507 = vmatpush1.msra.mxu0 0.0
        %508 = vmatprep.subr.mxu0 0.0
        %509 = vmatpush1.msra.mxu0 0.0
        %510 = vmatprep.subr.mxu0 0.0
        %511 = vmatpush1.msra.mxu0 0.0
        %512 = vmatprep.subr.mxu0 0.0
        %513 = vmatpush1.msra.mxu0 0.0
        %514 = vmatprep.subr.mxu0 0.0
        %515 = vmatpush1.msra.mxu0 0.0
        %516 = vmatprep.subr.mxu0 0.0
        %517 = vmatpush1.msra.mxu0 0.0
        %518 = vmatprep.subr.mxu0 0.0
        %519 = vmatpush1.msra.mxu0 0.0
        %520 = vmatprep.subr.mxu0 0.0
        %521 = vmatpush1.msra.mxu0 0.0
        %522 = vmatprep.subr.mxu0 0.0
        %523 = vmatpush1.msra.mxu0 0.0
        %524 = vmatprep.subr.mxu0 0.0
        %525 = vmatpush1.msra.mxu0 0.0
        %526 = vmatprep.subr.mxu0 0.0
        %527 = vmatpush1.msra.mxu0 0.0
        %528 = vmatprep.subr.mxu0 0.0
        %529 = vmatpush1.msra.mxu0 0.0
        %530 = vmatprep.subr.mxu0 0.0
        %531 = vmatpush1.msra.mxu0 0.0
        %532 = vmatprep.subr.mxu0 0.0
        %533 = vmatpush1.msra.mxu0 0.0
        %534 = vmatprep.subr.mxu0 0.0
        %535 = vmatpush1.msra.mxu0 0.0
        %536 = vmatprep.subr.mxu0 0.0
        %537 = vmatpush1.msra.mxu0 0.0
        %538 = vmatprep.subr.mxu0 0.0
        %539 = vmatpush1.msra.mxu0 0.0
        %540 = vmatprep.mubr.f32.mxu0 0.0
        %541 = vmatmul.mubr.f32.gmra.mrb[0].mxu0 %v381
        %v542 = vpop.f32.mrb[0].mxu0
        %v543 = vadd.f32 0.0, %v542
        %v544 = vpop.f32.mrb[0].mxu0
        %545 = vmatprep.mubr.f32.mxu0 0.0
        %546 = vmatmul.mubr.f32.gmra.mrb[0].mxu0 %v384
        %v547 = vpop.f32.mrb[0].mxu0
        %v548 = vadd.f32 0.0, %v547
        %v549 = vpop.f32.mrb[0].mxu0
        %550 = vmatprep.mubr.f32.mxu0 0.0
        %551 = vmatmul.mubr.f32.gmra.mrb[0].mxu0 %v387
        %v552 = vpop.f32.mrb[0].mxu0
        %v553 = vadd.f32 0.0, %v552
        %v554 = vpop.f32.mrb[0].mxu0
        %555 = vmatprep.mubr.f32.mxu0 0.0
        %556 = vmatmul.mubr.f32.gmra.mrb[0].mxu0 %v390
        %v557 = vpop.f32.mrb[0].mxu0
        %v558 = vadd.f32 0.0, %v557
        %v559 = vpop.f32.mrb[0].mxu0
        %560 = vmatprep.mubr.f32.mxu0 0.0
        %561 = vmatmul.mubr.f32.gmra.mrb[0].mxu0 %v393
        %v562 = vpop.f32.mrb[0].mxu0
        %v563 = vadd.f32 0.0, %v562
        %v564 = vpop.f32.mrb[0].mxu0
        %565 = vmatprep.mubr.f32.mxu0 0.0
        %566 = vmatmul.mubr.f32.gmra.mrb[0].mxu0 %v396
        %v567 = vpop.f32.mrb[0].mxu0
        %v568 = vadd.f32 0.0, %v567
        %v569 = vpop.f32.mrb[0].mxu0
        %570 = vmatprep.mubr.f32.mxu0 0.0
        %571 = vmatmul.mubr.f32.gmra.mrb[0].mxu0 %v399
        %v572 = vpop.f32.mrb[0].mxu0
        %v573 = vadd.f32 0.0, %v572
        %v574 = vpop.f32.mrb[0].mxu0
        %575 = vmatprep.mubr.f32.mxu0 0.0
        %576 = vmatmul.mubr.f32.gmra.mrb[0].mxu0 %v402
        %v577 = vpop.f32.mrb[0].mxu0
        %v578 = vadd.f32 0.0, %v577
        %v579 = vpop.f32.mrb[0].mxu0
        %580 = vmatprep.mubr.f32.mxu0 0.0
        %581 = vmatmul.mubr.f32.gmra.mrb[0].mxu0 %v405
        %v582 = vpop.f32.mrb[0].mxu0
        %v583 = vadd.f32 0.0, %v582
        %v584 = vpop.f32.mrb[0].mxu0
        %585 = vmatprep.mubr.f32.mxu0 0.0
        %586 = vmatmul.mubr.f32.gmra.mrb[0].mxu0 %v408
        %v587 = vpop.f32.mrb[0].mxu0
        %v588 = vadd.f32 0.0, %v587
        %v589 = vpop.f32.mrb[0].mxu0
        %590 = vmatprep.mubr.f32.mxu0 0.0
        %591 = vmatmul.mubr.f32.gmra.mrb[0].mxu0 %v411
        %v592 = vpop.f32.mrb[0].mxu0
        %v593 = vadd.f32 0.0, %v592
        %v594 = vpop.f32.mrb[0].mxu0
        %595 = vmatprep.mubr.f32.mxu0 0.0
        %596 = vmatmul.mubr.f32.gmra.mrb[0].mxu0 %v414
        %v597 = vpop.f32.mrb[0].mxu0
        %v598 = vadd.f32 0.0, %v597
        %v599 = vpop.f32.mrb[0].mxu0
        %600 = vmatprep.mubr.f32.mxu0 0.0
        %601 = vmatmul.mubr.f32.gmra.mrb[0].mxu0 %v417
        %v602 = vpop.f32.mrb[0].mxu0
        %v603 = vadd.f32 0.0, %v602
        %v604 = vpop.f32.mrb[0].mxu0
        %605 = vmatprep.mubr.f32.mxu0 0.0
        %606 = vmatmul.mubr.f32.gmra.mrb[0].mxu0 %v420
        %v607 = vpop.f32.mrb[0].mxu0
        %v608 = vadd.f32 0.0, %v607
        %v609 = vpop.f32.mrb[0].mxu0
        %610 = vmatprep.mubr.f32.mxu0 0.0
        %611 = vmatmul.mubr.f32.gmra.mrb[0].mxu0 %v423
        %v612 = vpop.f32.mrb[0].mxu0
        %v613 = vadd.f32 0.0, %v612
        %v614 = vpop.f32.mrb[0].mxu0
        %615 = vmatprep.mubr.f32.mxu0 0.0
        %616 = vmatmul.mubr.f32.gmra.mrb[0].mxu0 %v426
        %v617 = vpop.f32.mrb[0].mxu0
        %v618 = vadd.f32 0.0, %v617
        %v619 = vpop.f32.mrb[0].mxu0
        %620 = vmatprep.mubr.f32.mxu0 0.0
        %621 = vmatmul.mubr.f32.gmra.mrb[0].mxu0 %v429
        %v622 = vpop.f32.mrb[0].mxu0
        %v623 = vadd.f32 0.0, %v622
        %v624 = vpop.f32.mrb[0].mxu0
        %625 = vmatprep.mubr.f32.mxu0 0.0
        %626 = vmatmul.mubr.f32.gmra.mrb[0].mxu0 %v432
        %v627 = vpop.f32.mrb[0].mxu0
        %v628 = vadd.f32 0.0, %v627
        %v629 = vpop.f32.mrb[0].mxu0
        %630 = vmatprep.mubr.f32.mxu0 0.0
        %631 = vmatmul.mubr.f32.gmra.mrb[0].mxu0 %v435
        %v632 = vpop.f32.mrb[0].mxu0
        %v633 = vadd.f32 0.0, %v632
        %v634 = vpop.f32.mrb[0].mxu0
        %635 = vmatprep.mubr.f32.mxu0 0.0
        %636 = vmatmul.mubr.f32.gmra.mrb[0].mxu0 %v438
        %v637 = vpop.f32.mrb[0].mxu0
        %v638 = vadd.f32 0.0, %v637
        %v639 = vpop.f32.mrb[0].mxu0
        %640 = vmatprep.mubr.f32.mxu0 0.0
        %641 = vmatmul.mubr.f32.gmra.mrb[0].mxu0 %v441
        %v642 = vpop.f32.mrb[0].mxu0
        %v643 = vadd.f32 0.0, %v642
        %v644 = vpop.f32.mrb[0].mxu0
        %645 = vmatprep.mubr.f32.mxu0 0.0
        %646 = vmatmul.mubr.f32.gmra.mrb[0].mxu0 %v444
        %v647 = vpop.f32.mrb[0].mxu0
        %v648 = vadd.f32 0.0, %v647
        %v649 = vpop.f32.mrb[0].mxu0
        %650 = vmatprep.mubr.f32.mxu0 0.0
        %651 = vmatmul.mubr.f32.gmra.mrb[0].mxu0 %v447
        %v652 = vpop.f32.mrb[0].mxu0
        %v653 = vadd.f32 0.0, %v652
        %v654 = vpop.f32.mrb[0].mxu0
        %655 = vmatprep.mubr.f32.mxu0 0.0
        %656 = vmatmul.mubr.f32.gmra.mrb[0].mxu0 %v450
        %v657 = vpop.f32.mrb[0].mxu0
        %v658 = vadd.f32 0.0, %v657
        %v659 = vpop.f32.mrb[0].mxu0
        %660 = vmatprep.mubr.f32.mxu0 0.0
        %661 = vmatmul.mubr.f32.gmra.mrb[0].mxu0 %v453
        %v662 = vpop.f32.mrb[0].mxu0
        %v663 = vadd.f32 0.0, %v662
        %v664 = vpop.f32.mrb[0].mxu0
        %665 = vmatprep.mubr.f32.mxu0 0.0
        %666 = vmatmul.mubr.f32.gmra.mrb[0].mxu0 %v456
        %v667 = vpop.f32.mrb[0].mxu0
        %v668 = vadd.f32 0.0, %v667
        %v669 = vpop.f32.mrb[0].mxu0
        %670 = vmatprep.mubr.f32.mxu0 0.0
        %671 = vmatmul.mubr.f32.gmra.mrb[0].mxu0 %v459
        %v672 = vpop.f32.mrb[0].mxu0
        %v673 = vadd.f32 0.0, %v672
        %v674 = vpop.f32.mrb[0].mxu0
        %675 = vmatprep.mubr.f32.mxu0 0.0
        %676 = vmatmul.mubr.f32.gmra.mrb[0].mxu0 %v462
        %v677 = vpop.f32.mrb[0].mxu0
        %v678 = vadd.f32 0.0, %v677
        %v679 = vpop.f32.mrb[0].mxu0
        %680 = vmatprep.mubr.f32.mxu0 0.0
        %681 = vmatmul.mubr.f32.gmra.mrb[0].mxu0 %v465
        %v682 = vpop.f32.mrb[0].mxu0
        %v683 = vadd.f32 0.0, %v682
        %v684 = vpop.f32.mrb[0].mxu0
        %685 = vmatprep.mubr.f32.mxu0 0.0
        %686 = vmatmul.mubr.f32.gmra.mrb[0].mxu0 %v468
        %v687 = vpop.f32.mrb[0].mxu0
        %v688 = vadd.f32 0.0, %v687
        %v689 = vpop.f32.mrb[0].mxu0
        %690 = vmatprep.mubr.f32.mxu0 0.0
        %691 = vmatmul.mubr.f32.gmra.mrb[0].mxu0 %v471
        %v692 = vpop.f32.mrb[0].mxu0
        %v693 = vadd.f32 0.0, %v692
        %v694 = vpop.f32.mrb[0].mxu0
        %695 = vmatprep.mubr.f32.mxu0 0.0
        %696 = vmatmul.mubr.f32.gmra.mrb[0].mxu0 %v474
        %v697 = vpop.f32.mrb[0].mxu0
        %v698 = vadd.f32 0.0, %v697
        %v699 = vpop.f32.mrb[0].mxu0
        %700 = vdwg.mxu0
        %v701 = vmul.f32 %v543, 11.313708
        %v702 = vmul.f32 %v548, 11.313708
        %v703 = vmul.f32 %v553, 11.313708
        %v704 = vmul.f32 %v558, 11.313708
        %v705 = vmul.f32 %v563, 11.313708
        %v706 = vmul.f32 %v568, 11.313708
        %v707 = vmul.f32 %v573, 11.313708
        %v708 = vmul.f32 %v578, 11.313708
        %v709 = vmul.f32 %v583, 11.313708
        %v710 = vmul.f32 %v588, 11.313708
        %v711 = vmul.f32 %v593, 11.313708
        %v712 = vmul.f32 %v598, 11.313708
        %v713 = vmul.f32 %v603, 11.313708
        %v714 = vmul.f32 %v608, 11.313708
        %v715 = vmul.f32 %v613, 11.313708
        %v716 = vmul.f32 %v618, 11.313708
        %v717 = vmul.f32 %v623, 11.313708
        %v718 = vmul.f32 %v628, 11.313708
        %v719 = vmul.f32 %v633, 11.313708
        %v720 = vmul.f32 %v638, 11.313708
        %v721 = vmul.f32 %v643, 11.313708
        %v722 = vmul.f32 %v648, 11.313708
        %v723 = vmul.f32 %v653, 11.313708
        %v724 = vmul.f32 %v658, 11.313708
        %v725 = vmul.f32 %v663, 11.313708
        %v726 = vmul.f32 %v668, 11.313708
        %v727 = vmul.f32 %v673, 11.313708
        %v728 = vmul.f32 %v678, 11.313708
        %v729 = vmul.f32 %v683, 11.313708
        %v730 = vmul.f32 %v688, 11.313708
        %v731 = vmul.f32 %v693, 11.313708
        %v732 = vmul.f32 %v698, 11.313708
        %733 = vst [vmem:[%s137] sm:$0xff] %v701
        %734 = vst [vmem:[%s137 + $0x8] sm:$0xff] %v702
        %735 = vst [vmem:[%s137 + $0x10] sm:$0xff] %v703
        %736 = vst [vmem:[%s137 + $0x18] sm:$0xff] %v704
        %737 = vst [vmem:[%s137 + $0x20] sm:$0xff] %v705
        %738 = vst [vmem:[%s137 + $0x28] sm:$0xff] %v706
        %739 = vst [vmem:[%s137 + $0x30] sm:$0xff] %v707
        %740 = vst [vmem:[%s137 + $0x38] sm:$0xff] %v708
        %741 = vst [vmem:[%s137 + $0x40] sm:$0xff] %v709
        %742 = vst [vmem:[%s137 + $0x48] sm:$0xff] %v710
        %743 = vst [vmem:[%s137 + $0x50] sm:$0xff] %v711
        %744 = vst [vmem:[%s137 + $0x58] sm:$0xff] %v712
        %745 = vst [vmem:[%s137 + $0x60] sm:$0xff] %v713
        %746 = vst [vmem:[%s137 + $0x68] sm:$0xff] %v714
        %747 = vst [vmem:[%s137 + $0x70] sm:$0xff] %v715
        %748 = vst [vmem:[%s137 + $0x78] sm:$0xff] %v716
        %749 = vst [vmem:[%s137 + $0x80] sm:$0xff] %v717
        %750 = vst [vmem:[%s137 + $0x88] sm:$0xff] %v718
        %751 = vst [vmem:[%s137 + $0x90] sm:$0xff] %v719
        %752 = vst [vmem:[%s137 + $0x98] sm:$0xff] %v720
        %753 = vst [vmem:[%s137 + $0xa0] sm:$0xff] %v721
        %754 = vst [vmem:[%s137 + $0xa8] sm:$0xff] %v722
        %755 = vst [vmem:[%s137 + $0xb0] sm:$0xff] %v723
        %756 = vst [vmem:[%s137 + $0xb8] sm:$0xff] %v724
        %757 = vst [vmem:[%s137 + $0xc0] sm:$0xff] %v725
        %758 = vst [vmem:[%s137 + $0xc8] sm:$0xff] %v726
        %759 = vst [vmem:[%s137 + $0xd0] sm:$0xff] %v727
        %760 = vst [vmem:[%s137 + $0xd8] sm:$0xff] %v728
        %761 = vst [vmem:[%s137 + $0xe0] sm:$0xff] %v729
        %762 = vst [vmem:[%s137 + $0xe8] sm:$0xff] %v730
        %763 = vst [vmem:[%s137 + $0xf0] sm:$0xff] %v731
        %764 = vst [vmem:[%s137 + $0xf8] sm:$0xff] %v732
        %s765 = sand.u32 %s71, 1
        %s766 = scalar_lea.sflag [#allocation3], %s765
        %s767 = sand.u32 %s71, 1
        %s768 = smul.addr %s767, 256
        %s769 = scalar_lea.vmem [#allocation2], %s768
        // Predicated region
        $region29: #{tpu_custom_call.1} parent=27 // pred_check
          %p770 = pneg %p81
        $region30: #{tpu_custom_call.1} parent=27 // pred_check_branch
          %772 = sbr.rel (%p770) target = $region32
        $region31: #{tpu_custom_call.1} parent=27 // pred_region
          %s773 = smul.u32 32, %s16
          %s775 = ssub.s32 4096, 4096
          %776 = vsyncadd %s766, %s775
          %s777 = smul.addr %s773, 128
          %s778 = scalar_lea.hbm %s2, %s777
          %s779 = sshll.u32 %s769, 4
          %s780 = int_to_ptr.vmem [resolvable:$true] %s779
          %785 = dma.vmem_to_hbm [thread:$0]  %s780, 4096, %s778, %s766, 128, 128, 8
        $region32: #{tpu_custom_call.1} parent=27 // pred_fallthru
          _
      $region28: #{tpu_custom_call.1} parent=5 // pred_fallthru
        _
      %p786 = scmp.le.s32.totalorder 2, %s11
      // Predicated region
      $region33: #{tpu_custom_call.1} parent=5 // pred_check
        %p787 = pneg %p786
      $region34: #{tpu_custom_call.1} parent=5 // pred_check_branch
        %789 = sbr.rel (%p787) target = $region36
      $region35: #{tpu_custom_call.1} parent=5 // pred_region
        %s790 = ssub.s32 %s11, 2
        // Predicated region
        $region37: #{tpu_custom_call.1} parent=35 // pred_check
          %p791 = pneg %p87
        $region38: #{tpu_custom_call.1} parent=35 // pred_check_branch
          %793 = sbr.rel (%p791) target = $region40
        $region39: #{tpu_custom_call.1} parent=35 // pred_region
          %s794 = sand.u32 %s72, 1
          %s795 = scalar_lea.sflag [#allocation3], %s794
          %s796 = sand.u32 %s72, 1
          %s797 = smul.addr %s796, 256
          %s798 = scalar_lea.vmem [#allocation2], %s797
          %799 = dma.done %s795, 4096
        $region40: #{tpu_custom_call.1} parent=35 // pred_fallthru
          _
      $region36: #{tpu_custom_call.1} parent=5 // pred_fallthru
        _
    $region6: #{tpu_custom_call.1} parent=1 // loop_footer
      %s15 = sadd.s32 1, %s11
    $region7: #{tpu_custom_call.1} parent=1 // loop_footer_branch
      %10 = sbr.rel target = $region3
    $region8: #{tpu_custom_call.1} parent=1 // loop_exit
      _
    %800 = vsyncpa [#allocation3], 1
    %s801 = scalar_lea.sflag [#allocation3], 1
    %802 = vsyncpa %s801, 1

</llo_original>
